<compile_context>
chip_gen: v5e
topology: v5e:2x2
jax: 0.10.0
libtpu: 0.0.40
codegen_flags: <defaults>
</compile_context>

<pallas_src>
import math

import jax
import jax.numpy as jnp
from jax.experimental import pallas as pl
from jax.experimental.pallas import tpu as pltpu


# ----------------------------------------------------------------------------
# Pallas kernel: whole-tree GRU221 traversal + fused mu/logvar head
# ----------------------------------------------------------------------------
def tree_encoder_kernel(idx_ref,            # (N, 2) int32, SMEM (scalar prefetch)
                        x_ref,              # (1, B, I) current node's target
                        wi_ref, bi_ref,     # (I, 3H), (1, 3H)   fused input gates
                        wh1_ref, wh2_ref,   # (H, 3H), (H, 3H)   fused hidden gates
                        bh_ref,             # (1, 3H)
                        hw_ref, hb_ref,     # (H, 2O), (1, 2O)   fused mu|logvar head
                        out_ref,            # (B, 2O)            written at root step
                        h_scr):             # (N+1, B, H) VMEM   hidden states; slot 0 == zeros
    n = pl.program_id(0)
    num_nodes = pl.num_programs(0)
    H = h_scr.shape[2]
    f32 = jnp.float32

    # Slot 0 is the "missing child" zero state; initialize it once.
    @pl.when(n == 0)
    def _():
        h_scr[0] = jnp.zeros(h_scr.shape[1:], f32)

    h1 = h_scr[idx_ref[n, 0]]               # (B, H) left-child hidden (or zeros)
    h2 = h_scr[idx_ref[n, 1]]               # (B, H) right-child hidden (or zeros)
    x = x_ref[0]                            # (B, I)

    # Fused gate matmuls:
    #   gi = [wir|wiz|win](x),  gh = [whr|whz|whn](concat([h1, h2]))
    gi = jnp.dot(x, wi_ref[...], preferred_element_type=f32) + bi_ref[...]
    gh = (jnp.dot(h1, wh1_ref[...], preferred_element_type=f32)
          + jnp.dot(h2, wh2_ref[...], preferred_element_type=f32)
          + bh_ref[...])

    r = jax.nn.sigmoid(gi[:, 0 * H:1 * H] + gh[:, 0 * H:1 * H])
    z = jax.nn.sigmoid(gi[:, 1 * H:2 * H] + gh[:, 1 * H:2 * H])
    c = jnp.tanh(gi[:, 2 * H:3 * H] + r * gh[:, 2 * H:3 * H])
    h_new = (1.0 - z) * c + z * 0.5 * h1 + z * 0.5 * h2

    h_scr[n + 1] = h_new                    # this node's slot = post-order index + 1

    # Root node (last in post-order): fused mu|logvar head, one lane-dense write.
    @pl.when(n == num_nodes - 1)
    def _():
        out_ref[...] = (jnp.dot(h_new, hw_ref[...], preferred_element_type=f32)
                        + hb_ref[...])


# ----------------------------------------------------------------------------
# Wrapper: single pallas_call over the topologically sorted node list
# ----------------------------------------------------------------------------
@jax.jit
def tree_encode(child_idx, targets, fused):
    """child_idx: (N, 2) int32 slots (0 = missing child, else post_idx + 1)
       targets  : (N, B, I) float32 node targets in post-order
       returns (mu, logvar), each (B, 1, O)."""
    N, B, I = targets.shape
    H = fused["wh1"].shape[0]
    THREE_H = 3 * H
    TWO_O = fused["hw"].shape[1]

    const2 = lambda n, idx: (0, 0)
    out = pl.pallas_call(
        tree_encoder_kernel,
        out_shape=jax.ShapeDtypeStruct((B, TWO_O), jnp.float32),
        grid_spec=pltpu.PrefetchScalarGridSpec(
            num_scalar_prefetch=1,
            grid=(N,),
            in_specs=[
                pl.BlockSpec((1, B, I), lambda n, idx: (n, 0, 0)),   # targets
                pl.BlockSpec((I, THREE_H), const2),                  # wi
                pl.BlockSpec((1, THREE_H), const2),                  # bi
                pl.BlockSpec((H, THREE_H), const2),                  # wh1
                pl.BlockSpec((H, THREE_H), const2),                  # wh2
                pl.BlockSpec((1, THREE_H), const2),                  # bh
                pl.BlockSpec((H, TWO_O), const2),                    # head weight
                pl.BlockSpec((1, TWO_O), const2),                    # head bias
            ],
            out_specs=pl.BlockSpec((B, TWO_O), const2),
            scratch_shapes=[pltpu.VMEM((N + 1, B, H), jnp.float32)],
        ),
        compiler_params=pltpu.CompilerParams(
            dimension_semantics=("arbitrary",)),
    )(child_idx, targets,
      fused["wi"], fused["bi"], fused["wh1"], fused["wh2"], fused["bh"],
      fused["hw"], fused["hb"])

    O = TWO_O // 2
    mu, logvar = out[:, :O], out[:, O:]
    return mu[:, None, :], logvar[:, None, :]


# ----------------------------------------------------------------------------
# Parameter init (mirrors nn.Linear defaults + xavier_uniform_ on weights)
# ----------------------------------------------------------------------------
def _xavier_uniform(key, fan_in, fan_out):
    bound = math.sqrt(6.0 / (fan_in + fan_out))
    # stored (in, out) so the kernel does x @ W  (== x @ torch_weight.T)
    return jax.random.uniform(key, (fan_in, fan_out), jnp.float32, -bound, bound)


def _linear_bias(key, fan_in, fan_out):
    bound = 1.0 / math.sqrt(fan_in)
    return jax.random.uniform(key, (1, fan_out), jnp.float32, -bound, bound)


def init_encoder_params(key, input_size, hidden_size, output_size):
    I, H, O = input_size, hidden_size, output_size
    keys = jax.random.split(key, 16)

    def lin(kw, kb, fin, fout):
        return _xavier_uniform(kw, fin, fout), _linear_bias(kb, fin, fout)

    wir_w, wir_b = lin(keys[0], keys[1], I, H)
    whr_w, whr_b = lin(keys[2], keys[3], 2 * H, H)
    wiz_w, wiz_b = lin(keys[4], keys[5], I, H)
    whz_w, whz_b = lin(keys[6], keys[7], 2 * H, H)
    win_w, win_b = lin(keys[8], keys[9], I, H)
    whn_w, whn_b = lin(keys[10], keys[11], 2 * H, H)
    mu_w, mu_b = lin(keys[12], keys[13], H, O)
    lv_w, lv_b = lin(keys[14], keys[15], H, O)

    return dict(wir_w=wir_w, wir_b=wir_b, whr_w=whr_w, whr_b=whr_b,
                wiz_w=wiz_w, wiz_b=wiz_b, whz_w=whz_w, whz_b=whz_b,
                win_w=win_w, win_b=win_b, whn_w=whn_w, whn_b=whn_b,
                mu_w=mu_w, mu_b=mu_b, lv_w=lv_w, lv_b=lv_b)


def fuse_params(raw, hidden_size):
    """Host-side (one-time) fusion of the 8 Linear layers into 7 kernel operands."""
    H = hidden_size
    wi = jnp.concatenate([raw["wir_w"], raw["wiz_w"], raw["win_w"]], axis=1)   # (I, 3H)
    bi = jnp.concatenate([raw["wir_b"], raw["wiz_b"], raw["win_b"]], axis=1)   # (1, 3H)
    wh = jnp.concatenate([raw["whr_w"], raw["whz_w"], raw["whn_w"]], axis=1)   # (2H, 3H)
    bh = jnp.concatenate([raw["whr_b"], raw["whz_b"], raw["whn_b"]], axis=1)   # (1, 3H)
    hw = jnp.concatenate([raw["mu_w"], raw["lv_w"]], axis=1)                   # (H, 2O)
    hb = jnp.concatenate([raw["mu_b"], raw["lv_b"]], axis=1)                   # (1, 2O)
    return dict(wi=wi, bi=bi, wh1=wh[:H], wh2=wh[H:], bh=bh, hw=hw, hb=hb)


# ----------------------------------------------------------------------------
# Tree structure + flattening (Python data-structure glue, like torch recursion)
# ----------------------------------------------------------------------------
class Node:
    def __init__(self, target, left=None, right=None):
        self.target = target   # (B, 1, I)
        self.left = left
        self.right = right


def flatten_tree(root):
    """Post-order flatten: children before parents, root last.
    Returns (targets (N, B, I), child_idx (N, 2) int32).  Child slot 0 means
    "missing child"; slot k > 0 is the hidden state of post-order node k-1."""
    targets, child_idx = [], []

    def visit(node):
        l = visit(node.left) if node.left is not None else 0
        r = visit(node.right) if node.right is not None else 0
        B = node.target.shape[0]
        targets.append(jnp.reshape(node.target, (B, -1)))
        child_idx.append((l, r))
        return len(targets)          # this node's slot = post-order index + 1

    visit(root)
    return jnp.stack(targets, axis=0), jnp.asarray(child_idx, dtype=jnp.int32)


# ----------------------------------------------------------------------------
# Pure-JAX reference (mirrors the torch recursive forward) for validation
# ----------------------------------------------------------------------------
def reference_encoder(root, raw, hidden_size):
    HIGH = jax.lax.Precision.HIGHEST

    def lin(x, w, b):
        return jnp.dot(x, w, precision=HIGH) + b

    def rec(node):
        B = node.target.shape[0]
        zeros = jnp.zeros((B, hidden_size), jnp.float32)
        h1 = rec(node.left) if node.left is not None else zeros
        h2 = rec(node.right) if node.right is not None else zeros
        x = jnp.reshape(node.target, (B, -1))
        h = jnp.concatenate([h1, h2], axis=1)
        r = jax.nn.sigmoid(lin(x, raw["wir_w"], raw["wir_b"]) + lin(h, raw["whr_w"], raw["whr_b"]))
        z = jax.nn.sigmoid(lin(x, raw["wiz_w"], raw["wiz_b"]) + lin(h, raw["whz_w"], raw["whz_b"]))
        c = jnp.tanh(lin(x, raw["win_w"], raw["win_b"]) + r * lin(h, raw["whn_w"], raw["whn_b"]))
        return (1.0 - z) * c + z * 0.5 * h1 + z * 0.5 * h2

    henc = rec(root)
    mu = lin(henc, raw["mu_w"], raw["mu_b"])
    logvar = lin(henc, raw["lv_w"], raw["lv_b"])
    return mu[:, None, :], logvar[:, None, :]


# ----------------------------------------------------------------------------
# Main
# ----------------------------------------------------------------------------
if __name__ == "__main__":
    B, I, H, O = 4, 32, 32, 16

    key = jax.random.PRNGKey(0)
    pkey, dkey = jax.random.split(key)
    raw = init_encoder_params(pkey, I, H, O)
    fused = fuse_params(raw, H)

    # Deterministic 5-node expression tree:
    #        n0
    #       /  \
    #     n1    n2
    #    /  \
    #  n3    n4
    tkeys = jax.random.split(dkey, 5)
    leaf_targets = [jax.random.normal(k, (B, 1, I), jnp.float32) for k in tkeys]
    n3 = Node(leaf_targets[3])
    n4 = Node(leaf_targets[4])
    n1 = Node(leaf_targets[1], left=n3, right=n4)
    n2 = Node(leaf_targets[2])
    n0 = Node(leaf_targets[0], left=n1, right=n2)

    node_targets, child_idx = flatten_tree(n0)     # (5, B, I), (5, 2)

    mu, logvar = tree_encode(child_idx, node_targets, fused)
    jax.block_until_ready((mu, logvar))

    assert mu.shape == (B, 1, O) and logvar.shape == (B, 1, O)
    assert bool(jnp.all(jnp.isfinite(mu))) and bool(jnp.all(jnp.isfinite(logvar)))

    # Cross-check against the pure-JAX recursive reference.
    mu_ref, lv_ref = reference_encoder(n0, raw, H)
    assert bool(jnp.allclose(mu, mu_ref, rtol=2e-2, atol=2e-2)), \
        float(jnp.max(jnp.abs(mu - mu_ref)))
    assert bool(jnp.allclose(logvar, lv_ref, rtol=2e-2, atol=2e-2)), \
        float(jnp.max(jnp.abs(logvar - lv_ref)))

    print("KERNEL_OK")
</pallas_src>

<mosaic_0001>
module attributes {stable_mosaic.version = 11 : i64} {
  func.func @tree_encoder_kernel(%arg0: i32, %arg1: memref<5x2xi32, #tpu.memory_space<smem>>, %arg2: memref<1x4x32xf32, #tpu.memory_space<vmem>>, %arg3: memref<32x96xf32, #tpu.memory_space<vmem>>, %arg4: memref<1x96xf32, #tpu.memory_space<vmem>>, %arg5: memref<32x96xf32, #tpu.memory_space<vmem>>, %arg6: memref<32x96xf32, #tpu.memory_space<vmem>>, %arg7: memref<1x96xf32, #tpu.memory_space<vmem>>, %arg8: memref<32x32xf32, #tpu.memory_space<vmem>>, %arg9: memref<1x32xf32, #tpu.memory_space<vmem>>, %arg10: memref<4x32xf32, #tpu.memory_space<vmem>>, %arg11: memref<6x4x32xf32, #tpu.memory_space<vmem>>) attributes {dimension_semantics = [#tpu.dimension_semantics<arbitrary>], iteration_bounds = array<i64: 5>, scalar_prefetch = 1 : i64, scratch_operands = 1 : i64, tpu.core_type = #tpu.core_type<tc>, window_params = [{transform_indices = @transform_0, window_bounds = array<i64: 1, 4, 32>}, {pipeline_mode = #tpu.pipeline_mode<synchronous>, transform_indices = @transform_1, window_bounds = array<i64: 32, 96>}, {pipeline_mode = #tpu.pipeline_mode<synchronous>, transform_indices = @transform_2, window_bounds = array<i64: 1, 96>}, {pipeline_mode = #tpu.pipeline_mode<synchronous>, transform_indices = @transform_3, window_bounds = array<i64: 32, 96>}, {pipeline_mode = #tpu.pipeline_mode<synchronous>, transform_indices = @transform_4, window_bounds = array<i64: 32, 96>}, {pipeline_mode = #tpu.pipeline_mode<synchronous>, transform_indices = @transform_5, window_bounds = array<i64: 1, 96>}, {pipeline_mode = #tpu.pipeline_mode<synchronous>, transform_indices = @transform_6, window_bounds = array<i64: 32, 32>}, {pipeline_mode = #tpu.pipeline_mode<synchronous>, transform_indices = @transform_7, window_bounds = array<i64: 1, 32>}, {pipeline_mode = #tpu.pipeline_mode<synchronous>, transform_indices = @transform_8, window_bounds = array<i64: 4, 32>}]} {
    %c0_i32 = arith.constant 0 : i32
    %0 = arith.cmpi eq, %arg0, %c0_i32 : i32
    %1 = arith.extui %0 : i1 to i32
    %c0_i32_0 = arith.constant 0 : i32
    %2 = arith.cmpi ne, %1, %c0_i32_0 : i32
    scf.if %2 {
      %cst_28 = arith.constant 0.000000e+00 : f32
      %68 = vector.broadcast %cst_28 : f32 to vector<4x32xf32>
      %c0_29 = arith.constant 0 : index
      %c0_30 = arith.constant 0 : index
      %c0_31 = arith.constant 0 : index
      %69 = vector.load %arg11[%c0_29, %c0_30, %c0_31] : memref<6x4x32xf32, #tpu.memory_space<vmem>>, vector<1x4x32xf32>
      %70 = vector.shape_cast %69 : vector<1x4x32xf32> to vector<4x32xf32>
      %71 = vector.shape_cast %68 : vector<4x32xf32> to vector<1x4x32xf32>
      tpu.vector_store %arg11[%c0_29, %c0_30, %c0_31], %71 {strides = array<i32>} : memref<6x4x32xf32, #tpu.memory_space<vmem>>, vector<1x4x32xf32>,
    } else {
    }
    %3 = arith.index_cast %arg0 : i32 to index
    %c0 = arith.constant 0 : index
    %4 = memref.load %arg1[%3, %c0] : memref<5x2xi32, #tpu.memory_space<smem>>
    %5 = arith.index_cast %4 : i32 to index
    %c0_1 = arith.constant 0 : index
    %c0_2 = arith.constant 0 : index
    %6 = vector.load %arg11[%5, %c0_1, %c0_2] : memref<6x4x32xf32, #tpu.memory_space<vmem>>, vector<1x4x32xf32>
    %7 = vector.shape_cast %6 : vector<1x4x32xf32> to vector<4x32xf32>
    %8 = arith.index_cast %arg0 : i32 to index
    %c1 = arith.constant 1 : index
    %9 = memref.load %arg1[%8, %c1] : memref<5x2xi32, #tpu.memory_space<smem>>
    %10 = arith.index_cast %9 : i32 to index
    %c0_3 = arith.constant 0 : index
    %c0_4 = arith.constant 0 : index
    %11 = vector.load %arg11[%10, %c0_3, %c0_4] : memref<6x4x32xf32, #tpu.memory_space<vmem>>, vector<1x4x32xf32>
    %12 = vector.shape_cast %11 : vector<1x4x32xf32> to vector<4x32xf32>
    %c0_5 = arith.constant 0 : index
    %c0_6 = arith.constant 0 : index
    %c0_7 = arith.constant 0 : index
    %13 = vector.load %arg2[%c0_5, %c0_6, %c0_7] : memref<1x4x32xf32, #tpu.memory_space<vmem>>, vector<1x4x32xf32>
    %14 = vector.shape_cast %13 : vector<1x4x32xf32> to vector<4x32xf32>
    %c0_8 = arith.constant 0 : index
    %c0_9 = arith.constant 0 : index
    %15 = vector.load %arg3[%c0_8, %c0_9] : memref<32x96xf32, #tpu.memory_space<vmem>>, vector<32x96xf32>
    %cst = arith.constant dense<0.000000e+00> : vector<4x96xf32>
    %16 = tpu.matmul %14, %15, %cst {dimension_numbers = #tpu.dot_dimension_numbers<[1], [0], [0], [1], [0, 0, 1, 1], [], []>} : vector<4x32xf32>, vector<32x96xf32>, vector<4x96xf32> -> vector<4x96xf32>
    %c0_10 = arith.constant 0 : index
    %c0_11 = arith.constant 0 : index
    %17 = vector.load %arg4[%c0_10, %c0_11] : memref<1x96xf32, #tpu.memory_space<vmem>>, vector<1x96xf32>
    %18 = vector.broadcast %17 : vector<1x96xf32> to vector<4x96xf32>
    %19 = arith.addf %16, %18 : vector<4x96xf32>
    %c0_12 = arith.constant 0 : index
    %c0_13 = arith.constant 0 : index
    %20 = vector.load %arg5[%c0_12, %c0_13] : memref<32x96xf32, #tpu.memory_space<vmem>>, vector<32x96xf32>
    %cst_14 = arith.constant dense<0.000000e+00> : vector<4x96xf32>
    %21 = tpu.matmul %7, %20, %cst_14 {dimension_numbers = #tpu.dot_dimension_numbers<[1], [0], [0], [1], [0, 0, 1, 1], [], []>} : vector<4x32xf32>, vector<32x96xf32>, vector<4x96xf32> -> vector<4x96xf32>
    %c0_15 = arith.constant 0 : index
    %c0_16 = arith.constant 0 : index
    %22 = vector.load %arg6[%c0_15, %c0_16] : memref<32x96xf32, #tpu.memory_space<vmem>>, vector<32x96xf32>
    %cst_17 = arith.constant dense<0.000000e+00> : vector<4x96xf32>
    %23 = tpu.matmul %12, %22, %cst_17 {dimension_numbers = #tpu.dot_dimension_numbers<[1], [0], [0], [1], [0, 0, 1, 1], [], []>} : vector<4x32xf32>, vector<32x96xf32>, vector<4x96xf32> -> vector<4x96xf32>
    %24 = arith.addf %21, %23 : vector<4x96xf32>
    %c0_18 = arith.constant 0 : index
    %c0_19 = arith.constant 0 : index
    %25 = vector.load %arg7[%c0_18, %c0_19] : memref<1x96xf32, #tpu.memory_space<vmem>>, vector<1x96xf32>
    %26 = vector.broadcast %25 : vector<1x96xf32> to vector<4x96xf32>
    %27 = arith.addf %24, %26 : vector<4x96xf32>
    %28 = vector.extract_strided_slice %19 {offsets = [0, 0], sizes = [4, 32], strides = [1, 1]} : vector<4x96xf32> to vector<4x32xf32>
    %29 = vector.extract_strided_slice %27 {offsets = [0, 0], sizes = [4, 32], strides = [1, 1]} : vector<4x96xf32> to vector<4x32xf32>
    %30 = arith.addf %28, %29 : vector<4x32xf32>
    %31 = arith.negf %30 : vector<4x32xf32>
    %32 = math.exp %31 : vector<4x32xf32>
    %cst_20 = arith.constant 1.000000e+00 : f32
    %33 = vector.broadcast %cst_20 : f32 to vector<4x32xf32>
    %34 = arith.addf %33, %32 : vector<4x32xf32>
    %35 = arith.divf %33, %34 : vector<4x32xf32>
    %36 = vector.extract_strided_slice %19 {offsets = [0, 32], sizes = [4, 32], strides = [1, 1]} : vector<4x96xf32> to vector<4x32xf32>
    %37 = vector.extract_strided_slice %27 {offsets = [0, 32], sizes = [4, 32], strides = [1, 1]} : vector<4x96xf32> to vector<4x32xf32>
    %38 = arith.addf %36, %37 : vector<4x32xf32>
    %39 = arith.negf %38 : vector<4x32xf32>
    %40 = math.exp %39 : vector<4x32xf32>
    %cst_21 = arith.constant 1.000000e+00 : f32
    %41 = vector.broadcast %cst_21 : f32 to vector<4x32xf32>
    %42 = arith.addf %41, %40 : vector<4x32xf32>
    %43 = arith.divf %41, %42 : vector<4x32xf32>
    %44 = vector.extract_strided_slice %19 {offsets = [0, 64], sizes = [4, 32], strides = [1, 1]} : vector<4x96xf32> to vector<4x32xf32>
    %45 = vector.extract_strided_slice %27 {offsets = [0, 64], sizes = [4, 32], strides = [1, 1]} : vector<4x96xf32> to vector<4x32xf32>
    %46 = arith.mulf %35, %45 : vector<4x32xf32>
    %47 = arith.addf %44, %46 : vector<4x32xf32>
    %48 = math.tanh %47 : vector<4x32xf32>
    %cst_22 = arith.constant 1.000000e+00 : f32
    %49 = vector.broadcast %cst_22 : f32 to vector<4x32xf32>
    %50 = arith.subf %49, %43 : vector<4x32xf32>
    %51 = arith.mulf %50, %48 : vector<4x32xf32>
    %cst_23 = arith.constant 5.000000e-01 : f32
    %52 = vector.broadcast %cst_23 : f32 to vector<4x32xf32>
    %53 = arith.mulf %43, %52 : vector<4x32xf32>
    %54 = arith.mulf %53, %7 : vector<4x32xf32>
    %55 = arith.addf %51, %54 : vector<4x32xf32>
    %cst_24 = arith.constant 5.000000e-01 : f32
    %56 = vector.broadcast %cst_24 : f32 to vector<4x32xf32>
    %57 = arith.mulf %43, %56 : vector<4x32xf32>
    %58 = arith.mulf %57, %12 : vector<4x32xf32>
    %59 = arith.addf %55, %58 : vector<4x32xf32>
    %c1_i32 = arith.constant 1 : i32
    %60 = arith.addi %arg0, %c1_i32 : i32
    %61 = arith.index_cast %60 : i32 to index
    %c0_25 = arith.constant 0 : index
    %c0_26 = arith.constant 0 : index
    %62 = vector.load %arg11[%61, %c0_25, %c0_26] : memref<6x4x32xf32, #tpu.memory_space<vmem>>, vector<1x4x32xf32>
    %63 = vector.shape_cast %62 : vector<1x4x32xf32> to vector<4x32xf32>
    %64 = vector.shape_cast %59 : vector<4x32xf32> to vector<1x4x32xf32>
    tpu.vector_store %arg11[%61, %c0_25, %c0_26], %64 {strides = array<i32>} : memref<6x4x32xf32, #tpu.memory_space<vmem>>, vector<1x4x32xf32>,
    %c4_i32 = arith.constant 4 : i32
    %65 = arith.cmpi eq, %arg0, %c4_i32 : i32
    %66 = arith.extui %65 : i1 to i32
    %c0_i32_27 = arith.constant 0 : i32
    %67 = arith.cmpi ne, %66, %c0_i32_27 : i32
    scf.if %67 {
      %c0_28 = arith.constant 0 : index
      %c0_29 = arith.constant 0 : index
      %68 = vector.load %arg8[%c0_28, %c0_29] : memref<32x32xf32, #tpu.memory_space<vmem>>, vector<32x32xf32>
      %cst_30 = arith.constant dense<0.000000e+00> : vector<4x32xf32>
      %69 = tpu.matmul %59, %68, %cst_30 {dimension_numbers = #tpu.dot_dimension_numbers<[1], [0], [0], [1], [0, 0, 1, 1], [], []>} : vector<4x32xf32>, vector<32x32xf32>, vector<4x32xf32> -> vector<4x32xf32>
      %c0_31 = arith.constant 0 : index
      %c0_32 = arith.constant 0 : index
      %70 = vector.load %arg9[%c0_31, %c0_32] : memref<1x32xf32, #tpu.memory_space<vmem>>, vector<1x32xf32>
      %71 = vector.broadcast %70 : vector<1x32xf32> to vector<4x32xf32>
      %72 = arith.addf %69, %71 : vector<4x32xf32>
      %c0_33 = arith.constant 0 : index
      %c0_34 = arith.constant 0 : index
      %73 = vector.load %arg10[%c0_33, %c0_34] : memref<4x32xf32, #tpu.memory_space<vmem>>, vector<4x32xf32>
      tpu.vector_store %arg10[%c0_33, %c0_34], %72 {strides = array<i32>} : memref<4x32xf32, #tpu.memory_space<vmem>>, vector<4x32xf32>,
    } else {
    }
    return
  }
  func.func @transform_0(%arg0: i32, %arg1: memref<5x2xi32, #tpu.memory_space<smem>>) -> (i32, i32, i32) {
    %c0_i32 = arith.constant 0 : i32
    %c0_i32_0 = arith.constant 0 : i32
    %c0_i32_1 = arith.constant 0 : i32
    return %arg0, %c0_i32, %c0_i32_0 : i32, i32, i32
  }
  func.func @transform_1(%arg0: i32, %arg1: memref<5x2xi32, #tpu.memory_space<smem>>) -> (i32, i32) {
    %c0_i32 = arith.constant 0 : i32
    %c0_i32_0 = arith.constant 0 : i32
    %c0_i32_1 = arith.constant 0 : i32
    return %c0_i32, %c0_i32_0 : i32, i32
  }
  func.func @transform_2(%arg0: i32, %arg1: memref<5x2xi32, #tpu.memory_space<smem>>) -> (i32, i32) {
    %c0_i32 = arith.constant 0 : i32
    %c0_i32_0 = arith.constant 0 : i32
    %c0_i32_1 = arith.constant 0 : i32
    return %c0_i32, %c0_i32_0 : i32, i32
  }
  func.func @transform_3(%arg0: i32, %arg1: memref<5x2xi32, #tpu.memory_space<smem>>) -> (i32, i32) {
    %c0_i32 = arith.constant 0 : i32
    %c0_i32_0 = arith.constant 0 : i32
    %c0_i32_1 = arith.constant 0 : i32
    return %c0_i32, %c0_i32_0 : i32, i32
  }
  func.func @transform_4(%arg0: i32, %arg1: memref<5x2xi32, #tpu.memory_space<smem>>) -> (i32, i32) {
    %c0_i32 = arith.constant 0 : i32
    %c0_i32_0 = arith.constant 0 : i32
    %c0_i32_1 = arith.constant 0 : i32
    return %c0_i32, %c0_i32_0 : i32, i32
  }
  func.func @transform_5(%arg0: i32, %arg1: memref<5x2xi32, #tpu.memory_space<smem>>) -> (i32, i32) {
    %c0_i32 = arith.constant 0 : i32
    %c0_i32_0 = arith.constant 0 : i32
    %c0_i32_1 = arith.constant 0 : i32
    return %c0_i32, %c0_i32_0 : i32, i32
  }
  func.func @transform_6(%arg0: i32, %arg1: memref<5x2xi32, #tpu.memory_space<smem>>) -> (i32, i32) {
    %c0_i32 = arith.constant 0 : i32
    %c0_i32_0 = arith.constant 0 : i32
    %c0_i32_1 = arith.constant 0 : i32
    return %c0_i32, %c0_i32_0 : i32, i32
  }
  func.func @transform_7(%arg0: i32, %arg1: memref<5x2xi32, #tpu.memory_space<smem>>) -> (i32, i32) {
    %c0_i32 = arith.constant 0 : i32
    %c0_i32_0 = arith.constant 0 : i32
    %c0_i32_1 = arith.constant 0 : i32
    return %c0_i32, %c0_i32_0 : i32, i32
  }
  func.func @transform_8(%arg0: i32, %arg1: memref<5x2xi32, #tpu.memory_space<smem>>) -> (i32, i32) {
    %c0_i32 = arith.constant 0 : i32
    %c0_i32_0 = arith.constant 0 : i32
    %c0_i32_1 = arith.constant 0 : i32
    return %c0_i32, %c0_i32_0 : i32, i32
  }
}

</mosaic_0001>

<llo_original>
// kernel: tree_encode.1
$region0: #{tree_encode.1}
  #allocation0 [shape = 'u32[]', space=smem, size = 0x4, offset = 0x4, fixed_abs, tag = 'smem constant byte address 0x4 - core index']
  #allocation1 [shape = 'u32[72,128]{1,0:T(1,128)}', space=vmem, size = 0x9000, scoped, tag = 'internal scratch']
  #allocation2 [shape = 'f32[6,4,32]{2,1,0:T(4,128)}', space=vmem, size = 0x3000, scoped, tag = 'scratch operand']
  #allocation3 [shape = 's32[1]{0}', space=sflag, size = 0x4, scoped, tag = 'scoped memory for tree_encode.1']
  #allocation4 [shape = 'u8[4096]{0}', space=smem, size = 0x1000, scoped, tag = 'prefetched SMEM operand 0']
  %s0 = inlined_call_operand.vmem [shape: s32[5,2], index: 0, kind: input, shape index: {}]
  %s1 = inlined_call_operand.hbm [shape: f32[5,4,32], index: 1, kind: input, shape index: {}]
  %s2 = inlined_call_operand.hbm [shape: f32[32,96], index: 2, kind: input, shape index: {}]
  %s3 = inlined_call_operand.vmem [shape: f32[1,96], index: 3, kind: input, shape index: {}]
  %s4 = inlined_call_operand.hbm [shape: f32[32,96], index: 4, kind: input, shape index: {}]
  %s5 = inlined_call_operand.hbm [shape: f32[32,96], index: 5, kind: input, shape index: {}]
  %s6 = inlined_call_operand.vmem [shape: f32[1,96], index: 6, kind: input, shape index: {}]
  %s7 = inlined_call_operand.hbm [shape: f32[32,32], index: 7, kind: input, shape index: {}]
  %s8 = inlined_call_operand.vmem [shape: f32[1,32], index: 8, kind: input, shape index: {}]
  %s9 = inlined_call_operand.vmem [shape: f32[4,32], index: 9, kind: output, shape index: {}]
  %s10 = sld [smem:[#allocation0]]
  $region93: #{tree_encode.1} parent=0
    _
  %s12 = ssub.s32 1, %s10
  %s13 = scalar_select 0, %s12, %s10
  %s15 = sshll.u32 %s0, 4
  %s16 = int_to_ptr.vmem [resolvable:$true] %s15
  %18 = dma.vmem_to_smem %s16, 128, [#allocation4], [#allocation3]
  %20 = dma.done [#allocation3], 128
  %21 = sfence
  $region1: #{tree_encode.1} parent=0
    #allocation5 [shape = 'u8[4096]{0}', space=vmem, size = 0x1000, scoped, tag = 'input window, operand 1']
    #allocation6 [shape = 's32[2]{0}', space=sflag, size = 0x8, scoped, tag = 'scoped memory for tree_encode.1']
    #allocation7 [shape = 'u8[16384]{0}', space=vmem, size = 0x4000, scoped, tag = 'input window, operand 2, single buffered']
    #allocation8 [shape = 's32[1]{0}', space=sflag, size = 0x4, scoped, tag = 'scoped memory for tree_encode.1']
    #allocation9 [shape = 'u8[16384]{0}', space=vmem, size = 0x4000, scoped, tag = 'input window, operand 4, single buffered']
    #allocation10 [shape = 'u8[16384]{0}', space=vmem, size = 0x4000, scoped, tag = 'input window, operand 5, single buffered']
    #allocation11 [shape = 's32[1]{0}', space=sflag, size = 0x4, scoped, tag = 'scoped memory for tree_encode.1']
    #allocation12 [shape = 'u8[16384]{0}', space=vmem, size = 0x4000, scoped, tag = 'input window, operand 7, single buffered']
    %22 = vsyncpa [#allocation6], 0
    %s23 = scalar_lea.sflag [#allocation6], 1
    %24 = vsyncpa %s23, 0
    %25 = vsyncpa [#allocation8], 0
    %26 = vsyncpa [#allocation11], 0
    loop: start=0, step=1, limit=7
    $region2: #{tree_encode.1} parent=1 // loop_pre_header
      _
    $region3: #{tree_encode.1} parent=1 // loop_header
      %s28 = sphi 0, %s32
      %p29 = scmp.ge.s32.totalorder %s28, 7
      %s38 = sphi 0, %s40
      %s41 = sphi 0, %s38
      %s42 = sphi 0, %s41
      %s58 = sphi 0, %s42
      %s62 = sphi 0, %s62
      %s64 = sphi 0, %s62
      %s65 = sphi 0, %s64
      %s79 = sphi 0, %s65
      %s83 = sphi 0, %s83
      %s85 = sphi 0, %s83
      %s86 = sphi 0, %s85
      %s100 = sphi 0, %s86
      %s104 = sphi 0, %s104
      %s106 = sphi 0, %s104
      %s107 = sphi 0, %s106
      %s121 = sphi 0, %s107
      %s125 = sphi 0, %s125
      %s127 = sphi 0, %s125
      %s128 = sphi 0, %s127
      %s142 = sphi 0, %s128
      %s146 = sphi 0, %s146
      %s148 = sphi 0, %s146
      %s149 = sphi 0, %s148
      %s163 = sphi 0, %s149
      %s167 = sphi 0, %s167
      %s169 = sphi 0, %s167
      %s170 = sphi 0, %s169
      %s184 = sphi 0, %s170
      %s188 = sphi 0, %s188
      %s190 = sphi 0, %s188
      %s191 = sphi 0, %s190
      %s205 = sphi 0, %s191
      %s209 = sphi 0, %s209
      %s211 = sphi 0, %s209
      %s212 = sphi 0, %s211
      %s226 = sphi 0, %s212
    $region4: #{tree_encode.1} parent=1 // loop_header_branch
      %31 = sbr.rel (%p29) target = $region8
    $region5: #{tree_encode.1} parent=1 // loop_body
      %s33 = ssub.s32 %s28, 1
      %s34 = ssub.s32 %s28, 2
      %s35 = sadd.s32 %s28, 1
      %s36 = ssub.s32 %s28, %s35
      %p37 = scmp.eq.s32.totalorder %s36, 0
      %s39 = sadd.s32 %s38, 1
      %s40 = scalar_select %p37, %s38, %s39
      %p43 = pneg %p37
      %p44 = scmp.eq.s32.totalorder %s28, 4
      %p45 = por %p43, %p44
      %p46 = scmp.ne.s32.totalorder %s38, %s41
      %p47 = scmp.eq.s32.totalorder %s28, 0
      %p48 = por %p46, %p47
      %p49 = scmp.ne.s32.totalorder %s38, %s41
      %p50 = scmp.eq.s32.totalorder %s33, 4
      %p51 = por %p49, %p50
      %p52 = scmp.ne.s32.totalorder %s41, %s42
      %p53 = scmp.eq.s32.totalorder %s33, 0
      %p54 = por %p52, %p53
      %p55 = scmp.ne.s32.totalorder %s41, %s42
      %p56 = scmp.eq.s32.totalorder %s34, 4
      %p57 = por %p55, %p56
      %p59 = scmp.ne.s32.totalorder %s42, %s58
      %p60 = scmp.eq.s32.totalorder %s34, 0
      %p61 = por %p59, %p60
      %s63 = sadd.s32 %s62, 1
      %p66 = scmp.eq.s32.totalorder %s28, 4
      %p67 = scmp.ne.s32.totalorder %s62, %s64
      %p68 = scmp.eq.s32.totalorder %s28, 0
      %p69 = por %p67, %p68
      %p70 = scmp.ne.s32.totalorder %s62, %s64
      %p71 = scmp.eq.s32.totalorder %s33, 4
      %p72 = por %p70, %p71
      %p73 = scmp.ne.s32.totalorder %s64, %s65
      %p74 = scmp.eq.s32.totalorder %s33, 0
      %p75 = por %p73, %p74
      %p76 = scmp.ne.s32.totalorder %s64, %s65
      %p77 = scmp.eq.s32.totalorder %s34, 4
      %p78 = por %p76, %p77
      %p80 = scmp.ne.s32.totalorder %s65, %s79
      %p81 = scmp.eq.s32.totalorder %s34, 0
      %p82 = por %p80, %p81
      %s84 = sadd.s32 %s83, 1
      %p87 = scmp.eq.s32.totalorder %s28, 4
      %p88 = scmp.ne.s32.totalorder %s83, %s85
      %p89 = scmp.eq.s32.totalorder %s28, 0
      %p90 = por %p88, %p89
      %p91 = scmp.ne.s32.totalorder %s83, %s85
      %p92 = scmp.eq.s32.totalorder %s33, 4
      %p93 = por %p91, %p92
      %p94 = scmp.ne.s32.totalorder %s85, %s86
      %p95 = scmp.eq.s32.totalorder %s33, 0
      %p96 = por %p94, %p95
      %p97 = scmp.ne.s32.totalorder %s85, %s86
      %p98 = scmp.eq.s32.totalorder %s34, 4
      %p99 = por %p97, %p98
      %p101 = scmp.ne.s32.totalorder %s86, %s100
      %p102 = scmp.eq.s32.totalorder %s34, 0
      %p103 = por %p101, %p102
      %s105 = sadd.s32 %s104, 1
      %p108 = scmp.eq.s32.totalorder %s28, 4
      %p109 = scmp.ne.s32.totalorder %s104, %s106
      %p110 = scmp.eq.s32.totalorder %s28, 0
      %p111 = por %p109, %p110
      %p112 = scmp.ne.s32.totalorder %s104, %s106
      %p113 = scmp.eq.s32.totalorder %s33, 4
      %p114 = por %p112, %p113
      %p115 = scmp.ne.s32.totalorder %s106, %s107
      %p116 = scmp.eq.s32.totalorder %s33, 0
      %p117 = por %p115, %p116
      %p118 = scmp.ne.s32.totalorder %s106, %s107
      %p119 = scmp.eq.s32.totalorder %s34, 4
      %p120 = por %p118, %p119
      %p122 = scmp.ne.s32.totalorder %s107, %s121
      %p123 = scmp.eq.s32.totalorder %s34, 0
      %p124 = por %p122, %p123
      %s126 = sadd.s32 %s125, 1
      %p129 = scmp.eq.s32.totalorder %s28, 4
      %p130 = scmp.ne.s32.totalorder %s125, %s127
      %p131 = scmp.eq.s32.totalorder %s28, 0
      %p132 = por %p130, %p131
      %p133 = scmp.ne.s32.totalorder %s125, %s127
      %p134 = scmp.eq.s32.totalorder %s33, 4
      %p135 = por %p133, %p134
      %p136 = scmp.ne.s32.totalorder %s127, %s128
      %p137 = scmp.eq.s32.totalorder %s33, 0
      %p138 = por %p136, %p137
      %p139 = scmp.ne.s32.totalorder %s127, %s128
      %p140 = scmp.eq.s32.totalorder %s34, 4
      %p141 = por %p139, %p140
      %p143 = scmp.ne.s32.totalorder %s128, %s142
      %p144 = scmp.eq.s32.totalorder %s34, 0
      %p145 = por %p143, %p144
      %s147 = sadd.s32 %s146, 1
      %p150 = scmp.eq.s32.totalorder %s28, 4
      %p151 = scmp.ne.s32.totalorder %s146, %s148
      %p152 = scmp.eq.s32.totalorder %s28, 0
      %p153 = por %p151, %p152
      %p154 = scmp.ne.s32.totalorder %s146, %s148
      %p155 = scmp.eq.s32.totalorder %s33, 4
      %p156 = por %p154, %p155
      %p157 = scmp.ne.s32.totalorder %s148, %s149
      %p158 = scmp.eq.s32.totalorder %s33, 0
      %p159 = por %p157, %p158
      %p160 = scmp.ne.s32.totalorder %s148, %s149
      %p161 = scmp.eq.s32.totalorder %s34, 4
      %p162 = por %p160, %p161
      %p164 = scmp.ne.s32.totalorder %s149, %s163
      %p165 = scmp.eq.s32.totalorder %s34, 0
      %p166 = por %p164, %p165
      %s168 = sadd.s32 %s167, 1
      %p171 = scmp.eq.s32.totalorder %s28, 4
      %p172 = scmp.ne.s32.totalorder %s167, %s169
      %p173 = scmp.eq.s32.totalorder %s28, 0
      %p174 = por %p172, %p173
      %p175 = scmp.ne.s32.totalorder %s167, %s169
      %p176 = scmp.eq.s32.totalorder %s33, 4
      %p177 = por %p175, %p176
      %p178 = scmp.ne.s32.totalorder %s169, %s170
      %p179 = scmp.eq.s32.totalorder %s33, 0
      %p180 = por %p178, %p179
      %p181 = scmp.ne.s32.totalorder %s169, %s170
      %p182 = scmp.eq.s32.totalorder %s34, 4
      %p183 = por %p181, %p182
      %p185 = scmp.ne.s32.totalorder %s170, %s184
      %p186 = scmp.eq.s32.totalorder %s34, 0
      %p187 = por %p185, %p186
      %s189 = sadd.s32 %s188, 1
      %p192 = scmp.eq.s32.totalorder %s28, 4
      %p193 = scmp.ne.s32.totalorder %s188, %s190
      %p194 = scmp.eq.s32.totalorder %s28, 0
      %p195 = por %p193, %p194
      %p196 = scmp.ne.s32.totalorder %s188, %s190
      %p197 = scmp.eq.s32.totalorder %s33, 4
      %p198 = por %p196, %p197
      %p199 = scmp.ne.s32.totalorder %s190, %s191
      %p200 = scmp.eq.s32.totalorder %s33, 0
      %p201 = por %p199, %p200
      %p202 = scmp.ne.s32.totalorder %s190, %s191
      %p203 = scmp.eq.s32.totalorder %s34, 4
      %p204 = por %p202, %p203
      %p206 = scmp.ne.s32.totalorder %s191, %s205
      %p207 = scmp.eq.s32.totalorder %s34, 0
      %p208 = por %p206, %p207
      %s210 = sadd.s32 %s209, 1
      %p213 = scmp.eq.s32.totalorder %s28, 4
      %p214 = scmp.ne.s32.totalorder %s209, %s211
      %p215 = scmp.eq.s32.totalorder %s28, 0
      %p216 = por %p214, %p215
      %p217 = scmp.ne.s32.totalorder %s209, %s211
      %p218 = scmp.eq.s32.totalorder %s33, 4
      %p219 = por %p217, %p218
      %p220 = scmp.ne.s32.totalorder %s211, %s212
      %p221 = scmp.eq.s32.totalorder %s33, 0
      %p222 = por %p220, %p221
      %p223 = scmp.ne.s32.totalorder %s211, %s212
      %p224 = scmp.eq.s32.totalorder %s34, 4
      %p225 = por %p223, %p224
      %p227 = scmp.ne.s32.totalorder %s212, %s226
      %p228 = scmp.eq.s32.totalorder %s34, 0
      %p229 = por %p227, %p228
      %p230 = scmp.le.s32.totalorder 1, %s28
      %p231 = scmp.lt.s32.totalorder %s28, 6
      %p232 = pnand %p230, %p231
      %p233 = pneg %p232
      // Predicated region
      $region9: #{tree_encode.1} parent=5 // pred_check
        _
      $region10: #{tree_encode.1} parent=5 // pred_check_branch
        %235 = sbr.rel (%p232) target = $region12
      $region11: #{tree_encode.1} parent=5 // pred_region
        %s236 = ssub.s32 %s28, 1
        // Predicated region
        $region13: #{tree_encode.1} parent=11 // pred_check
          %p237 = pneg %p75
        $region14: #{tree_encode.1} parent=11 // pred_check_branch
          %239 = sbr.rel (%p237) target = $region16
        $region15: #{tree_encode.1} parent=11 // pred_region
          %241 = vsyncadd [#allocation8], 0
          %s242 = sshll.u32 %s2, 4
          %s243 = int_to_ptr.hbm [resolvable:$true] %s242
          %s244 = sshll.u32 [#allocation7], 4
          %s245 = int_to_ptr.vmem [resolvable:$true] %s244
          %250 = dma.hbm_to_vmem [thread:$0]  %s243, 512, %s245, [#allocation8], 128, 128, 8
        $region16: #{tree_encode.1} parent=11 // pred_fallthru
          _
        // Predicated region
        $region17: #{tree_encode.1} parent=11 // pred_check
          %p251 = pneg %p96
        $region18: #{tree_encode.1} parent=11 // pred_check_branch
          %253 = sbr.rel (%p251) target = $region20
        $region19: #{tree_encode.1} parent=11 // pred_region
          _
        $region20: #{tree_encode.1} parent=11 // pred_fallthru
          _
        // Predicated region
        $region21: #{tree_encode.1} parent=11 // pred_check
          %p254 = pneg %p117
        $region22: #{tree_encode.1} parent=11 // pred_check_branch
          %256 = sbr.rel (%p254) target = $region24
        $region23: #{tree_encode.1} parent=11 // pred_region
          %258 = vsyncadd [#allocation8], 0
          %s259 = sshll.u32 %s4, 4
          %s260 = int_to_ptr.hbm [resolvable:$true] %s259
          %s261 = sshll.u32 [#allocation9], 4
          %s262 = int_to_ptr.vmem [resolvable:$true] %s261
          %267 = dma.hbm_to_vmem [thread:$0]  %s260, 512, %s262, [#allocation8], 128, 128, 8
        $region24: #{tree_encode.1} parent=11 // pred_fallthru
          _
        // Predicated region
        $region25: #{tree_encode.1} parent=11 // pred_check
          %p268 = pneg %p138
        $region26: #{tree_encode.1} parent=11 // pred_check_branch
          %270 = sbr.rel (%p268) target = $region28
        $region27: #{tree_encode.1} parent=11 // pred_region
          %272 = vsyncadd [#allocation11], 0
          %s273 = sshll.u32 %s5, 4
          %s274 = int_to_ptr.hbm [resolvable:$true] %s273
          %s275 = sshll.u32 [#allocation10], 4
          %s276 = int_to_ptr.vmem [resolvable:$true] %s275
          %281 = dma.hbm_to_vmem [thread:$0]  %s274, 512, %s276, [#allocation11], 128, 128, 8
        $region28: #{tree_encode.1} parent=11 // pred_fallthru
          _
        // Predicated region
        $region29: #{tree_encode.1} parent=11 // pred_check
          %p282 = pneg %p159
        $region30: #{tree_encode.1} parent=11 // pred_check_branch
          %284 = sbr.rel (%p282) target = $region32
        $region31: #{tree_encode.1} parent=11 // pred_region
          _
        $region32: #{tree_encode.1} parent=11 // pred_fallthru
          _
        // Predicated region
        $region33: #{tree_encode.1} parent=11 // pred_check
          %p285 = pneg %p180
        $region34: #{tree_encode.1} parent=11 // pred_check_branch
          %287 = sbr.rel (%p285) target = $region36
        $region35: #{tree_encode.1} parent=11 // pred_region
          %289 = vsyncadd [#allocation11], 0
          %s290 = sshll.u32 %s7, 4
          %s291 = int_to_ptr.hbm [resolvable:$true] %s290
          %s292 = sshll.u32 [#allocation12], 4
          %s293 = int_to_ptr.vmem [resolvable:$true] %s292
          %298 = dma.hbm_to_vmem [thread:$0]  %s291, 512, %s293, [#allocation11], 128, 128, 8
        $region36: #{tree_encode.1} parent=11 // pred_fallthru
          _
        // Predicated region
        $region37: #{tree_encode.1} parent=11 // pred_check
          %p299 = pneg %p201
        $region38: #{tree_encode.1} parent=11 // pred_check_branch
          %301 = sbr.rel (%p299) target = $region40
        $region39: #{tree_encode.1} parent=11 // pred_region
          _
        $region40: #{tree_encode.1} parent=11 // pred_fallthru
          _
      $region12: #{tree_encode.1} parent=5 // pred_fallthru
        _
      %p302 = scmp.lt.s32.totalorder %s28, 5
      // Predicated region
      $region41: #{tree_encode.1} parent=5 // pred_check
        %p303 = pneg %p302
      $region42: #{tree_encode.1} parent=5 // pred_check_branch
        %305 = sbr.rel (%p303) target = $region44
      $region43: #{tree_encode.1} parent=5 // pred_region
        // Predicated region
        $region45: #{tree_encode.1} parent=43 // pred_check
          %p306 = pneg %p48
        $region46: #{tree_encode.1} parent=43 // pred_check_branch
          %308 = sbr.rel (%p306) target = $region48
        $region47: #{tree_encode.1} parent=43 // pred_region
          %s309 = sand.u32 %s38, 1
          %s310 = scalar_lea.sflag [#allocation6], %s309
          %s311 = sand.u32 %s38, 1
          %s312 = smul.addr %s311, 4
          %s313 = scalar_lea.vmem [#allocation5], %s312
          %315 = vsyncadd %s310, 0
          %s316 = smul.addr %s28, 4
          %s317 = scalar_lea.hbm %s1, %s316
          %s319 = sshll.u32 %s317, 4
          %s320 = int_to_ptr.hbm [resolvable:$true] %s319
          %s321 = sshll.u32 %s313, 4
          %s322 = int_to_ptr.vmem [resolvable:$true] %s321
          %324 = dma.hbm_to_vmem [thread:$0]  %s320, 64, %s322, %s310
        $region48: #{tree_encode.1} parent=43 // pred_fallthru
          _
      $region44: #{tree_encode.1} parent=5 // pred_fallthru
        _
      %p325 = scmp.le.s32.totalorder 1, %s28
      %p326 = scmp.lt.s32.totalorder %s28, 6
      %p327 = pnand %p325, %p326
      %p328 = pneg %p327
      // Predicated region
      $region49: #{tree_encode.1} parent=5 // pred_check
        _
      $region50: #{tree_encode.1} parent=5 // pred_check_branch
        %330 = sbr.rel (%p327) target = $region52
      $region51: #{tree_encode.1} parent=5 // pred_region
        %s331 = ssub.s32 %s28, 1
        %s332 = sand.u32 %s41, 1
        %s333 = scalar_lea.sflag [#allocation6], %s332
        %s334 = sand.u32 %s41, 1
        %s335 = smul.addr %s334, 4
        %s336 = scalar_lea.vmem [#allocation5], %s335
        // Predicated region
        $region53: #{tree_encode.1} parent=51 // pred_check
          %p337 = pneg %p54
        $region54: #{tree_encode.1} parent=51 // pred_check_branch
          %339 = sbr.rel (%p337) target = $region56
        $region55: #{tree_encode.1} parent=51 // pred_region
          %341 = dma.done %s333, 64
        $region56: #{tree_encode.1} parent=51 // pred_fallthru
          _
        // Predicated region
        $region57: #{tree_encode.1} parent=51 // pred_check
          %p342 = pneg %p75
        $region58: #{tree_encode.1} parent=51 // pred_check_branch
          %344 = sbr.rel (%p342) target = $region60
        $region59: #{tree_encode.1} parent=51 // pred_region
          %346 = dma.done [#allocation8], 512
        $region60: #{tree_encode.1} parent=51 // pred_fallthru
          _
        // Predicated region
        $region61: #{tree_encode.1} parent=51 // pred_check
          %p347 = pneg %p117
        $region62: #{tree_encode.1} parent=51 // pred_check_branch
          %349 = sbr.rel (%p347) target = $region64
        $region63: #{tree_encode.1} parent=51 // pred_region
          %351 = dma.done [#allocation8], 512
        $region64: #{tree_encode.1} parent=51 // pred_fallthru
          _
        // Predicated region
        $region65: #{tree_encode.1} parent=51 // pred_check
          %p352 = pneg %p138
        $region66: #{tree_encode.1} parent=51 // pred_check_branch
          %354 = sbr.rel (%p352) target = $region68
        $region67: #{tree_encode.1} parent=51 // pred_region
          %356 = dma.done [#allocation11], 512
        $region68: #{tree_encode.1} parent=51 // pred_fallthru
          _
        // Predicated region
        $region69: #{tree_encode.1} parent=51 // pred_check
          %p357 = pneg %p180
        $region70: #{tree_encode.1} parent=51 // pred_check_branch
          %359 = sbr.rel (%p357) target = $region72
        $region71: #{tree_encode.1} parent=51 // pred_region
          %361 = dma.done [#allocation11], 512
        $region72: #{tree_encode.1} parent=51 // pred_fallthru
          _
        %s362 = sand.u32 %s41, 1
        %s363 = scalar_lea.sflag [#allocation6], %s362
        %s364 = sand.u32 %s41, 1
        %s365 = smul.addr %s364, 4
        %s366 = scalar_lea.vmem [#allocation5], %s365
        %p367 = pneg %p54
        %p368 = pneg %p51
        %p369 = pneg %p75
        %p370 = pneg %p72
        %p371 = pneg %p96
        %p372 = pneg %p93
        %p373 = pneg %p117
        %p374 = pneg %p114
        %p375 = pneg %p138
        %p376 = pneg %p135
        %p377 = pneg %p159
        %p378 = pneg %p156
        %p379 = pneg %p180
        %p380 = pneg %p177
        %p381 = pneg %p201
        %p382 = pneg %p198
        %p383 = pneg %p222
        %p384 = pneg %p219
        %p385 = scmp.eq.s32.totalorder %s33, 0
        // Predicated region
        $region73: #{tree_encode.1} parent=51 // pred_check
          %p386 = pneg %p385
        $region74: #{tree_encode.1} parent=51 // pred_check_branch
          %388 = sbr.rel (%p386) target = $region76
        $region75: #{tree_encode.1} parent=51 // pred_region
          %vm389 = vcmask 257024
          %390 = vst.msk [vmem:[#allocation2] sm:$0xf] %vm389, 0.0
        $region76: #{tree_encode.1} parent=51 // pred_fallthru
          _
        %s391 = smul.u32 %s33, 128
        %s392 = sld [smem:[#allocation4 + %s391]]
        %s393 = smul.u32 %s392, 4
        %s394 = scalar_lea.vmem [#allocation2], %s393
        %v395 = vld [vmem:[%s394] sm:$0xf]
        %s396 = sadd.s32 %s391, 1
        %s397 = sld [smem:[#allocation4 + %s396]]
        %s398 = smul.u32 %s397, 4
        %s399 = scalar_lea.vmem [#allocation2], %s398
        %v400 = vld [vmem:[%s399] sm:$0xf]
        %v401 = vld [vmem:[%s336] sm:$0xf]
        %v402 = vld [vmem:[#allocation7] sm:$0xff]
        %v403 = vld [vmem:[#allocation7 + $0x8] sm:$0xff]
        %v404 = vld [vmem:[#allocation7 + $0x10] sm:$0xff]
        %v405 = vld [vmem:[#allocation7 + $0x18] sm:$0xff]
        %v406 = vld [vmem:[%s3] sm:$0x1]
        %v408 = vperm.slane %v406, 0
        %vm410 = vcmask 261120
        %v412 = vsel %vm410, %v401, 0
        %414 = vmatpush.msra.mxu0 0.0
        %415 = vmatpush.msra.mxu0 0.0
        %416 = vmatpush.msra.mxu0 0.0
        %417 = vmatpush.msra.mxu0 0.0
        %418 = vmatpush.msra.mxu0 0.0
        %419 = vmatpush.msra.mxu0 0.0
        %420 = vmatpush.msra.mxu0 0.0
        %421 = vmatpush.msra.mxu0 0.0
        %422 = vmatpush.msra.mxu0 0.0
        %423 = vmatpush.msra.mxu0 0.0
        %424 = vmatpush.msra.mxu0 0.0
        %425 = vmatpush.msra.mxu0 0.0
        %426 = vmatpush.msra.mxu0 %v405
        %427 = vmatpush.msra.mxu0 %v404
        %428 = vmatpush.msra.mxu0 %v403
        %429 = vmatpush.msra.mxu0 %v402
        %430 = vmatmul.f32.gmra.mxu0 %v412
        %v431 = vpop.f32.mrf.mxu0
        %v432 = vadd.f32 %v408, %v431
        %433 = vdwg.mxu0
        %v434 = vld [vmem:[#allocation9] sm:$0xff]
        %v435 = vld [vmem:[#allocation9 + $0x8] sm:$0xff]
        %v436 = vld [vmem:[#allocation9 + $0x10] sm:$0xff]
        %v437 = vld [vmem:[#allocation9 + $0x18] sm:$0xff]
        %v438 = vld [vmem:[#allocation10] sm:$0xff]
        %v439 = vld [vmem:[#allocation10 + $0x8] sm:$0xff]
        %v440 = vld [vmem:[#allocation10 + $0x10] sm:$0xff]
        %v441 = vld [vmem:[#allocation10 + $0x18] sm:$0xff]
        %v443 = vsel %vm410, %v400, 0
        %445 = vmatpush.msra.mxu0 0.0
        %446 = vmatpush.msra.mxu0 0.0
        %447 = vmatpush.msra.mxu0 0.0
        %448 = vmatpush.msra.mxu0 0.0
        %449 = vmatpush.msra.mxu0 0.0
        %450 = vmatpush.msra.mxu0 0.0
        %451 = vmatpush.msra.mxu0 0.0
        %452 = vmatpush.msra.mxu0 0.0
        %453 = vmatpush.msra.mxu0 0.0
        %454 = vmatpush.msra.mxu0 0.0
        %455 = vmatpush.msra.mxu0 0.0
        %456 = vmatpush.msra.mxu0 0.0
        %457 = vmatpush.msra.mxu0 %v441
        %458 = vmatpush.msra.mxu0 %v440
        %459 = vmatpush.msra.mxu0 %v439
        %460 = vmatpush.msra.mxu0 %v438
        %461 = vmatmul.f32.gmra.mxu0 %v443
        %v462 = vpop.f32.mrf.mxu0
        %v463 = vadd.f32 0.0, %v462
        %464 = vdwg.mxu0
        %v466 = vsel %vm410, %v395, 0
        %468 = vmatpush.msra.mxu0 0.0
        %469 = vmatpush.msra.mxu0 0.0
        %470 = vmatpush.msra.mxu0 0.0
        %471 = vmatpush.msra.mxu0 0.0
        %472 = vmatpush.msra.mxu0 0.0
        %473 = vmatpush.msra.mxu0 0.0
        %474 = vmatpush.msra.mxu0 0.0
        %475 = vmatpush.msra.mxu0 0.0
        %476 = vmatpush.msra.mxu0 0.0
        %477 = vmatpush.msra.mxu0 0.0
        %478 = vmatpush.msra.mxu0 0.0
        %479 = vmatpush.msra.mxu0 0.0
        %480 = vmatpush.msra.mxu0 %v437
        %481 = vmatpush.msra.mxu0 %v436
        %482 = vmatpush.msra.mxu0 %v435
        %483 = vmatpush.msra.mxu0 %v434
        %484 = vmatmul.f32.gmra.mxu0 %v466
        %v485 = vpop.f32.mrf.mxu0
        %v486 = vadd.f32 %v463, %v485
        %487 = vdwg.mxu0
        %v488 = vld [vmem:[%s6] sm:$0x1]
        %v490 = vperm.slane %v488, 0
        %v492 = vadd.f32 %v486, %v490
        %v493 = vadd.f32 %v432, %v492
        %v494 = vxor.u32 %v493, 2147483648
        %v495 = vmul.f32 %v494, 1.442695
        %v496 = vpow.pop %v495
        %v497 = vadd.f32 %v496, 1.0
        %v498 = vrcp.pop %v497
        %v499 = vmul.f32 %v497, %v498
        %v500 = vsub.f32 1.0, %v499
        %v501 = vmul.f32 %v498, %v500
        %v502 = vadd.f32 %v498, %v501
        %vm503 = vweird.f32 %v497
        %vm504 = vweird.f32 %v498
        %vm505 = vmor %vm503, %vm504
        %v506 = vsel %vm505, %v498, %v502
        %v507 = vand.u32 2147483647, %v497
        %vm508 = vcmp.eq.f32.partialorder %v507, 8.507059e+37
        %v509 = vand.u32 %v497, 2147483648
        %v510 = vor.u32 1.1754944e-38, %v509
        %v511 = vsel %vm508, %v510, %v506
        %v512 = vmul.f32 1.0, %v511
        %514 = vrot.lane.b32.xlu0 %v492, 64
        %v515 = vpop.permute.xlu0 %514
        %v517 = vmul.f32 %v512, %v515
        %519 = vrot.lane.b32.xlu0 %v517, 64
        %v520 = vpop.permute.xlu0 %519
        %v522 = vadd.f32 %v432, %v520
        %v523 = vtanh.pop %v522
        %v524 = vsub.f32 1.0, %v512
        %526 = vrot.lane.b32.xlu0 %v523, 96
        %v527 = vpop.permute.xlu0 %526
        %v529 = vmul.f32 %v524, %v527
        %v530 = vmul.f32 %v512, 0.5
        %531 = vrot.lane.b32.xlu0 %v395, 32
        %v532 = vpop.permute.xlu0 %531
        %v534 = vmul.f32 %v530, %v532
        %v535 = vadd.f32 %v529, %v534
        %536 = vrot.lane.b32.xlu0 %v400, 32
        %v537 = vpop.permute.xlu0 %536
        %v539 = vmul.f32 %v530, %v537
        %v540 = vadd.f32 %v535, %v539
        %s541 = sadd.s32 %s33, 1
        %543 = vrot.lane.b32.xlu0 %v540, 96
        %v544 = vpop.permute.xlu0 %543
        %s546 = smul.u32 %s541, 4
        %s547 = scalar_lea.vmem [#allocation2], %s546
        %vm548 = vcmask 257024
        %549 = vst.msk [vmem:[%s547] sm:$0xf] %vm548, %v544
        %p550 = scmp.eq.s32.totalorder %s33, 4
        // Predicated region
        $region77: #{tree_encode.1} parent=51 // pred_check
          %p551 = pneg %p550
        $region78: #{tree_encode.1} parent=51 // pred_check_branch
          %553 = sbr.rel (%p551) target = $region80
        $region79: #{tree_encode.1} parent=51 // pred_region
          %v554 = vld [vmem:[#allocation12] sm:$0xff]
          %v555 = vld [vmem:[#allocation12 + $0x8] sm:$0xff]
          %v556 = vld [vmem:[#allocation12 + $0x10] sm:$0xff]
          %v557 = vld [vmem:[#allocation12 + $0x18] sm:$0xff]
          %v558 = vld [vmem:[%s8] sm:$0x1]
          %v560 = vperm.slane %v558, 0
          %v562 = vsel %vm410, %v544, 0
          %564 = vmatpush.msra.mxu0 0.0
          %565 = vmatpush.msra.mxu0 0.0
          %566 = vmatpush.msra.mxu0 0.0
          %567 = vmatpush.msra.mxu0 0.0
          %568 = vmatpush.msra.mxu0 0.0
          %569 = vmatpush.msra.mxu0 0.0
          %570 = vmatpush.msra.mxu0 0.0
          %571 = vmatpush.msra.mxu0 0.0
          %572 = vmatpush.msra.mxu0 0.0
          %573 = vmatpush.msra.mxu0 0.0
          %574 = vmatpush.msra.mxu0 0.0
          %575 = vmatpush.msra.mxu0 0.0
          %576 = vmatpush.msra.mxu0 %v557
          %577 = vmatpush.msra.mxu0 %v556
          %578 = vmatpush.msra.mxu0 %v555
          %579 = vmatpush.msra.mxu0 %v554
          %580 = vmatmul.f32.gmra.mxu0 %v562
          %v581 = vpop.f32.mrf.mxu0
          %v582 = vadd.f32 %v560, %v581
          %583 = vdwg.mxu0
          %584 = vst.msk [vmem:[%s9] sm:$0xf] %vm548, %v582
        $region80: #{tree_encode.1} parent=51 // pred_fallthru
          _
        // Predicated region
        $region81: #{tree_encode.1} parent=51 // pred_check
          %p585 = pneg %p219
        $region82: #{tree_encode.1} parent=51 // pred_check_branch
          %587 = sbr.rel (%p585) target = $region84
        $region83: #{tree_encode.1} parent=51 // pred_region
          _
        $region84: #{tree_encode.1} parent=51 // pred_fallthru
          _
        // Predicated region
        $region85: #{tree_encode.1} parent=51 // pred_check
          %p588 = pneg %p219
        $region86: #{tree_encode.1} parent=51 // pred_check_branch
          %590 = sbr.rel (%p588) target = $region88
        $region87: #{tree_encode.1} parent=51 // pred_region
          _
        $region88: #{tree_encode.1} parent=51 // pred_fallthru
          _
      $region52: #{tree_encode.1} parent=5 // pred_fallthru
        _
      %p591 = scmp.le.s32.totalorder 2, %s28
      // Predicated region
      $region89: #{tree_encode.1} parent=5 // pred_check
        %p592 = pneg %p591
      $region90: #{tree_encode.1} parent=5 // pred_check_branch
        %594 = sbr.rel (%p592) target = $region92
      $region91: #{tree_encode.1} parent=5 // pred_region
        %s595 = ssub.s32 %s28, 2
      $region92: #{tree_encode.1} parent=5 // pred_fallthru
        _
    $region6: #{tree_encode.1} parent=1 // loop_footer
      %s32 = sadd.s32 1, %s28
    $region7: #{tree_encode.1} parent=1 // loop_footer_branch
      %27 = sbr.rel target = $region3
    $region8: #{tree_encode.1} parent=1 // loop_exit
      _
    %596 = vsyncpa [#allocation6], 1
    %s597 = scalar_lea.sflag [#allocation6], 1
    %598 = vsyncpa %s597, 1
    %599 = vsyncpa [#allocation8], 1
    %600 = vsyncpa [#allocation11], 1

</llo_original>
